<compile_context>
chip_gen: v7x
topology: tpu7x:2x2x1
jax: 0.10.0
libtpu: 0.0.40
codegen_flags: <defaults>
</compile_context>

<pallas_src>
import jax
import jax.numpy as jnp
from jax.experimental import pallas as pl
from jax.experimental.pallas import tpu as pltpu


def _calib_kernel(x_ref, sel_ref, b_ref, o_ref):
    """One batch tile: (tr, 128) packed events -> (tr, g) calibrated energies.

    x_ref:   (tr, 128) f32 VMEM — g = 128 // l_pad events per row, l_pad
             consecutive lanes per event (row-major reshape of padded (B, L)).
    sel_ref: (128, g)  f32 VMEM — constant selection-weight matrix with the
             Linear weight folded in (zero in pad lanes / other groups).
    b_ref:   (1,)      f32 SMEM — bias scalar.
    o_ref:   (tr, g)   f32 VMEM — o[r, e] = dot(event r*g + e, w) + b.
    """
    o_ref[...] = (
        jnp.dot(x_ref[...], sel_ref[...], preferred_element_type=jnp.float32)
        + b_ref[0]
    )


def layer_calibration_forward(x: jax.Array,
                              weight: jax.Array,
                              bias: jax.Array,
                              *,
                              rows_per_tile: int = 4096) -> jax.Array:
    """Pallas implementation of LayerCalibration.forward (nn.Linear(L, 1)).

    Args:
      x:      (B, L) f32 — per-event per-calorimeter-layer energy sums.
      weight: (1, L) f32 — nn.Linear weight.
      bias:   (1,)   f32 — nn.Linear bias.
    Returns:
      (B, 1) f32 calibrated energy prediction.
    """
    B, L = x.shape
    x = x.astype(jnp.float32)
    w = jnp.asarray(weight, jnp.float32).reshape(L)
    b = jnp.asarray(bias, jnp.float32).reshape(1)

    # Pad the (tiny) layer axis to a power of two so events tile the 128-lane
    # vreg exactly; padded layers get zero selection weight (no effect).
    l_pad = max(int(pl.next_power_of_2(L)), 1)
    # TODO(synk): n_layers > 128 would need a different packing; calorimeter
    # layer counts are tiny (4 here) so that case is not implemented.
    assert l_pad <= 128, "n_layers > 128 not supported by this packing"
    g = 128 // l_pad                        # events per 128-lane row

    # Tiling: rows padded only to a multiple of 8 (never to a tile multiple);
    # a single grid step whenever the packed slab fits in one tile.
    r = pl.cdiv(B, g)                       # packed rows needed
    n_tiles = pl.cdiv(r, rows_per_tile)
    tr = pl.cdiv(pl.cdiv(r, n_tiles), 8) * 8
    r_pad = n_tiles * tr                    # wastes < 8*n_tiles rows total

    # Single pad straight to the final shape (at most one HBM copy, fusible
    # into the pallas_call operand), then a free contiguous reshape.
    pad_b = r_pad * g - B
    pad_l = l_pad - L
    if pad_b or pad_l:
        x = jnp.pad(x, ((0, pad_b), (0, pad_l)))
    x_dense = x.reshape(r_pad, 128)

    # Constant (128, g) selection-weight matrix: folds the Linear weight and
    # the per-event lane selection into one MXU contraction so the kernel
    # writes a lane-dense compact output (no strided gather afterwards).
    lane = jnp.arange(128)
    w_pad = jnp.pad(w, (0, pad_l))                         # (l_pad,)
    w_lane = w_pad[lane % l_pad]                           # weight tiled on lanes
    sel = jnp.where((lane[:, None] // l_pad) == jnp.arange(g)[None, :],
                    w_lane[:, None], 0.0).astype(jnp.float32)   # (128, g)

    out = pl.pallas_call(
        _calib_kernel,
        out_shape=jax.ShapeDtypeStruct((r_pad, g), jnp.float32),
        grid=(n_tiles,),
        in_specs=[
            pl.BlockSpec((tr, 128), lambda i: (i, 0)),           # packed events
            pl.BlockSpec((128, g), lambda i: (0, 0)),            # selection weights
            pl.BlockSpec(memory_space=pltpu.MemorySpace.SMEM),   # bias scalar
        ],
        out_specs=pl.BlockSpec((tr, g), lambda i: (i, 0)),
        compiler_params=pltpu.CompilerParams(
            # Batch tiles are independent -> "parallel" (shards across the two
            # TensorCores on v7x, neutral on v5e/v6e).
            dimension_semantics=("parallel",),
            # Let XLA fuse the pad/reshape producer into the x operand rather
            # than materializing another full HBM copy of the slab.
            allow_input_fusion=[True, False, False],
        ),
    )(x_dense, sel, b)

    # out[r, e] is event r*g + e, so a row-major flatten is exactly event
    # order; the first B entries are the valid ones (contiguous, no gather).
    return out.reshape(r_pad * g)[:B].reshape(B, 1)


if __name__ == "__main__":
    # Deterministic synthetic setup (no data files).
    key = jax.random.PRNGKey(0)
    k_x, k_w, k_b, k_x2, k_w3, k_b3, k_x3 = jax.random.split(key, 7)

    calib = jax.jit(layer_calibration_forward,
                    static_argnames=("rows_per_tile",))

    # Small shapes consistent with the module: batch of 8 events, 4 layers.
    B, L = 8, 4
    x = jax.random.uniform(k_x, (B, L), dtype=jnp.float32) * 10.0
    bound = 1.0 / jnp.sqrt(jnp.float32(L))
    weight = jax.random.uniform(k_w, (1, L), dtype=jnp.float32,
                                minval=-bound, maxval=bound)
    bias = jax.random.uniform(k_b, (1,), dtype=jnp.float32,
                              minval=-bound, maxval=bound)

    out = calib(x, weight, bias, rows_per_tile=4096)
    jax.block_until_ready(out)
    ref = x @ weight.T + bias[None, :]
    assert out.shape == (B, 1)
    assert jnp.allclose(out, ref, atol=1e-5, rtol=1e-5)

    # Large batch: packs to ~1.1 MiB -> fast single-grid-step path.
    B2 = 70000
    x2 = jax.random.uniform(k_x2, (B2, L), dtype=jnp.float32) * 10.0
    out2 = calib(x2, weight, bias, rows_per_tile=4096)
    jax.block_until_ready(out2)
    ref2 = x2 @ weight.T + bias[None, :]
    assert out2.shape == (B2, 1)
    assert jnp.allclose(out2, ref2, atol=1e-4, rtol=1e-5)

    # Same data through the multi-tile pipelined path (tiny tile only to
    # exercise the grid; perf runs should keep the default rows_per_tile).
    out3 = calib(x2, weight, bias, rows_per_tile=256)
    jax.block_until_ready(out3)
    assert jnp.allclose(out3, ref2, atol=1e-4, rtol=1e-5)

    # Non-power-of-two layer count (padded layer-axis / weight path).
    L3, B3 = 5, 1000
    x3 = jax.random.uniform(k_x3, (B3, L3), dtype=jnp.float32) * 10.0
    bound3 = 1.0 / jnp.sqrt(jnp.float32(L3))
    weight3 = jax.random.uniform(k_w3, (1, L3), dtype=jnp.float32,
                                 minval=-bound3, maxval=bound3)
    bias3 = jax.random.uniform(k_b3, (1,), dtype=jnp.float32,
                               minval=-bound3, maxval=bound3)
    out4 = calib(x3, weight3, bias3, rows_per_tile=4096)
    jax.block_until_ready(out4)
    ref4 = x3 @ weight3.T + bias3[None, :]
    assert out4.shape == (B3, 1)
    assert jnp.allclose(out4, ref4, atol=1e-5, rtol=1e-5)

    print("KERNEL_OK")
</pallas_src>

<mosaic_0001>
module attributes {stable_mosaic.version = 11 : i64} {
  func.func @_calib_kernel(%arg0: i32, %arg1: memref<8x128xf32, #tpu.memory_space<vmem>>, %arg2: memref<128x32xf32, #tpu.memory_space<vmem>>, %arg3: memref<1xf32, #tpu.memory_space<smem>>, %arg4: memref<8x32xf32, #tpu.memory_space<vmem>>) attributes {dimension_semantics = [#tpu.dimension_semantics<parallel>], iteration_bounds = array<i64: 1>, scalar_prefetch = 0 : i64, scratch_operands = 0 : i64, tpu.core_type = #tpu.core_type<tc>, window_params = [{transform_indices = @transform_0, window_bounds = array<i64: 8, 128>}, {pipeline_mode = #tpu.pipeline_mode<synchronous>, transform_indices = @transform_1, window_bounds = array<i64: 128, 32>}, {transform_indices = @transform_2, window_bounds = array<i64: 1>}, {transform_indices = @transform_3, window_bounds = array<i64: 8, 32>}]} {
    %c0 = arith.constant 0 : index
    %c0_0 = arith.constant 0 : index
    %0 = vector.load %arg1[%c0, %c0_0] : memref<8x128xf32, #tpu.memory_space<vmem>>, vector<8x128xf32>
    %c0_1 = arith.constant 0 : index
    %c0_2 = arith.constant 0 : index
    %1 = vector.load %arg2[%c0_1, %c0_2] : memref<128x32xf32, #tpu.memory_space<vmem>>, vector<128x32xf32>
    %cst = arith.constant dense<0.000000e+00> : vector<8x32xf32>
    %2 = tpu.matmul %0, %1, %cst {dimension_numbers = #tpu.dot_dimension_numbers<[1], [0], [0], [1], [0, 0, 1, 1], [], []>} : vector<8x128xf32>, vector<128x32xf32>, vector<8x32xf32> -> vector<8x32xf32>
    %c0_3 = arith.constant 0 : index
    %3 = memref.load %arg3[%c0_3] : memref<1xf32, #tpu.memory_space<smem>>
    %4 = vector.broadcast %3 : f32 to vector<8x32xf32>
    %5 = arith.addf %2, %4 : vector<8x32xf32>
    %c0_4 = arith.constant 0 : index
    %c0_5 = arith.constant 0 : index
    %6 = vector.load %arg4[%c0_4, %c0_5] : memref<8x32xf32, #tpu.memory_space<vmem>>, vector<8x32xf32>
    tpu.vector_store %arg4[%c0_4, %c0_5], %5 {strides = array<i32>} : memref<8x32xf32, #tpu.memory_space<vmem>>, vector<8x32xf32>,
    return
  }
  func.func @transform_0(%arg0: i32) -> (i32, i32) {
    %c0_i32 = arith.constant 0 : i32
    %c0_i32_0 = arith.constant 0 : i32
    return %arg0, %c0_i32 : i32, i32
  }
  func.func @transform_1(%arg0: i32) -> (i32, i32) {
    %c0_i32 = arith.constant 0 : i32
    %c0_i32_0 = arith.constant 0 : i32
    %c0_i32_1 = arith.constant 0 : i32
    return %c0_i32, %c0_i32_0 : i32, i32
  }
  func.func @transform_2(%arg0: i32) -> i32 {
    %c0_i32 = arith.constant 0 : i32
    %c0_i32_0 = arith.constant 0 : i32
    return %c0_i32 : i32
  }
  func.func @transform_3(%arg0: i32) -> (i32, i32) {
    %c0_i32 = arith.constant 0 : i32
    %c0_i32_0 = arith.constant 0 : i32
    return %arg0, %c0_i32 : i32, i32
  }
}

</mosaic_0001>

<llo_original>
// kernel: layer_calibration_forward.1
$region0: #{layer_calibration_forward.1}
  #allocation0 [shape = 'u32[]', space=smem, size = 0x4, offset = 0x4, fixed_abs, tag = 'smem constant byte address 0x4 - core index']
  #allocation1 [shape = 'u32[144,128]{1,0:T(1,128)}', space=vmem, size = 0x12000, scoped, tag = 'internal scratch']
  #allocation2 [shape = 'f32[1]{0:T(128)S(6)}', space=smem, size = 0x200, scoped, tag = 'scoped memory for layer_calibration_forward.1']
  %s0 = inlined_call_operand.vmem [shape: f32[8,128], index: 0, kind: input, shape index: {}]
  %s1 = inlined_call_operand.vmem [shape: f32[128,32], index: 1, kind: input, shape index: {}]
  %s2 = inlined_call_operand.<no memory space> [shape: f32[1], index: 2, kind: input, shape index: {}]
  %s3 = inlined_call_operand.vmem [shape: f32[8,32], index: 3, kind: output, shape index: {}]
  %s4 = sld [smem:[#allocation0]]
  $region22: #{layer_calibration_forward.1} parent=0
    _
  %s6 = ssub.s32 1, %s4
  %s7 = scalar_select 0, %s6, %s4
  %8 = sst [smem:[#allocation2]] %s2
  // Predicated region
  $region2: #{layer_calibration_forward.1} parent=0 // pred_check
    _
  $region3: #{layer_calibration_forward.1} parent=0 // pred_check_branch
    %10 = sbr.rel (0) target = $region5
  $region4: #{layer_calibration_forward.1} parent=0 // pred_region
    _
  $region5: #{layer_calibration_forward.1} parent=0 // pred_fallthru
    _
  // Predicated region
  $region6: #{layer_calibration_forward.1} parent=0 // pred_check
    _
  $region7: #{layer_calibration_forward.1} parent=0 // pred_check_branch
    %12 = sbr.rel (0) target = $region9
  $region8: #{layer_calibration_forward.1} parent=0 // pred_region
    _
  $region9: #{layer_calibration_forward.1} parent=0 // pred_fallthru
    _
  // Predicated region
  $region10: #{layer_calibration_forward.1} parent=0 // pred_check
    _
  $region11: #{layer_calibration_forward.1} parent=0 // pred_check_branch
    %14 = sbr.rel (0) target = $region13
  $region12: #{layer_calibration_forward.1} parent=0 // pred_region
    _
  $region13: #{layer_calibration_forward.1} parent=0 // pred_fallthru
    _
  %v15 = vld [vmem:[%s0] sm:$0xff]
  %v16 = vld [vmem:[%s1] sm:$0xff]
  %v17 = vld [vmem:[%s1 + $0x8] sm:$0xff]
  %v18 = vld [vmem:[%s1 + $0x10] sm:$0xff]
  %v19 = vld [vmem:[%s1 + $0x18] sm:$0xff]
  %v20 = vld [vmem:[%s1 + $0x20] sm:$0xff]
  %v21 = vld [vmem:[%s1 + $0x28] sm:$0xff]
  %v22 = vld [vmem:[%s1 + $0x30] sm:$0xff]
  %v23 = vld [vmem:[%s1 + $0x38] sm:$0xff]
  %v24 = vld [vmem:[%s1 + $0x40] sm:$0xff]
  %v25 = vld [vmem:[%s1 + $0x48] sm:$0xff]
  %v26 = vld [vmem:[%s1 + $0x50] sm:$0xff]
  %v27 = vld [vmem:[%s1 + $0x58] sm:$0xff]
  %v28 = vld [vmem:[%s1 + $0x60] sm:$0xff]
  %v29 = vld [vmem:[%s1 + $0x68] sm:$0xff]
  %v30 = vld [vmem:[%s1 + $0x70] sm:$0xff]
  %v31 = vld [vmem:[%s1 + $0x78] sm:$0xff]
  %s32 = sld [smem:[#allocation2]]
  %v33 = vstv %s32
  %34 = vmatprep.subr.mxu0 0.0
  %35 = vmatpush1.msra.mxu0 %v16
  %36 = vmatprep.subr.mxu0 0.0
  %37 = vmatpush1.msra.mxu0 %v17
  %38 = vmatprep.subr.mxu0 0.0
  %39 = vmatpush1.msra.mxu0 %v18
  %40 = vmatprep.subr.mxu0 0.0
  %41 = vmatpush1.msra.mxu0 %v19
  %42 = vmatprep.subr.mxu0 0.0
  %43 = vmatpush1.msra.mxu0 %v20
  %44 = vmatprep.subr.mxu0 0.0
  %45 = vmatpush1.msra.mxu0 %v21
  %46 = vmatprep.subr.mxu0 0.0
  %47 = vmatpush1.msra.mxu0 %v22
  %48 = vmatprep.subr.mxu0 0.0
  %49 = vmatpush1.msra.mxu0 %v23
  %50 = vmatprep.subr.mxu0 0.0
  %51 = vmatpush1.msra.mxu0 %v24
  %52 = vmatprep.subr.mxu0 0.0
  %53 = vmatpush1.msra.mxu0 %v25
  %54 = vmatprep.subr.mxu0 0.0
  %55 = vmatpush1.msra.mxu0 %v26
  %56 = vmatprep.subr.mxu0 0.0
  %57 = vmatpush1.msra.mxu0 %v27
  %58 = vmatprep.subr.mxu0 0.0
  %59 = vmatpush1.msra.mxu0 %v28
  %60 = vmatprep.subr.mxu0 0.0
  %61 = vmatpush1.msra.mxu0 %v29
  %62 = vmatprep.subr.mxu0 0.0
  %63 = vmatpush1.msra.mxu0 %v30
  %64 = vmatprep.subr.mxu0 0.0
  %65 = vmatpush1.msra.mxu0 %v31
  %66 = vmatprep.subr.mxu0 0.0
  %67 = vmatpush1.msra.mxu0 0.0
  %68 = vmatprep.subr.mxu0 0.0
  %69 = vmatpush1.msra.mxu0 0.0
  %70 = vmatprep.subr.mxu0 0.0
  %71 = vmatpush1.msra.mxu0 0.0
  %72 = vmatprep.subr.mxu0 0.0
  %73 = vmatpush1.msra.mxu0 0.0
  %74 = vmatprep.subr.mxu0 0.0
  %75 = vmatpush1.msra.mxu0 0.0
  %76 = vmatprep.subr.mxu0 0.0
  %77 = vmatpush1.msra.mxu0 0.0
  %78 = vmatprep.subr.mxu0 0.0
  %79 = vmatpush1.msra.mxu0 0.0
  %80 = vmatprep.subr.mxu0 0.0
  %81 = vmatpush1.msra.mxu0 0.0
  %82 = vmatprep.subr.mxu0 0.0
  %83 = vmatpush1.msra.mxu0 0.0
  %84 = vmatprep.subr.mxu0 0.0
  %85 = vmatpush1.msra.mxu0 0.0
  %86 = vmatprep.subr.mxu0 0.0
  %87 = vmatpush1.msra.mxu0 0.0
  %88 = vmatprep.subr.mxu0 0.0
  %89 = vmatpush1.msra.mxu0 0.0
  %90 = vmatprep.subr.mxu0 0.0
  %91 = vmatpush1.msra.mxu0 0.0
  %92 = vmatprep.subr.mxu0 0.0
  %93 = vmatpush1.msra.mxu0 0.0
  %94 = vmatprep.subr.mxu0 0.0
  %95 = vmatpush1.msra.mxu0 0.0
  %96 = vmatprep.subr.mxu0 0.0
  %97 = vmatpush1.msra.mxu0 0.0
  %98 = vmatprep.mubr.f32.mxu0 0.0
  %99 = vmatmul.mubr.f32.gmra.mrb[0].mxu0 %v15
  %v100 = vpop.f32.mrb[0].mxu0
  %v101 = vadd.f32 %v33, %v100
  %v102 = vpop.f32.mrb[0].mxu0
  %103 = vdwg.mxu0
  %vm104 = vcmask 261120
  %105 = vst.msk [vmem:[%s3] sm:$0xff] %vm104, %v101
  // Predicated region
  $region14: #{layer_calibration_forward.1} parent=0 // pred_check
    _
  $region15: #{layer_calibration_forward.1} parent=0 // pred_check_branch
    %107 = sbr.rel (0) target = $region17
  $region16: #{layer_calibration_forward.1} parent=0 // pred_region
    _
  $region17: #{layer_calibration_forward.1} parent=0 // pred_fallthru
    _
  // Predicated region
  $region18: #{layer_calibration_forward.1} parent=0 // pred_check
    _
  $region19: #{layer_calibration_forward.1} parent=0 // pred_check_branch
    %109 = sbr.rel (0) target = $region21
  $region20: #{layer_calibration_forward.1} parent=0 // pred_region
    _
  $region21: #{layer_calibration_forward.1} parent=0 // pred_fallthru
    _

</llo_original>
